<compile_context>
chip_gen: v7x
topology: tpu7x:2x2x1
jax: 0.10.0
libtpu: 0.0.40
codegen_flags: <defaults>
</compile_context>

<pallas_src>
import functools

import jax
import jax.numpy as jnp
from jax import lax
from jax.experimental import pallas as pl
from jax.experimental.pallas import tpu as pltpu


def _round_up(x, m):
    return ((x + m - 1) // m) * m


def _vmem_capacity_bytes():
    try:
        return int(pltpu.get_tpu_info().vmem_capacity_bytes)
    except Exception:
        return 64 * 1024 * 1024  # conservative fallback (v7x per-TC VMEM)


def _fits(tS, tE, tT, seq_dsz, out_dsz, budget):
    seq_bytes = 2 * tT * tE * seq_dsz        # double-buffered sequence tile
    out_bytes = 2 * tS * tE * out_dsz        # double-buffered output tile
    acc_bytes = tS * tE * 4                  # f32 accumulator (T-tiled path)
    mask_bytes = tS * tT * 8                 # iota (i32) + 0/1 mask materialization
    span_bytes = 2 * tS * 3 * 4
    return seq_bytes + out_bytes + acc_bytes + mask_bytes + span_bytes <= budget


def _pick_tiles(S_pad, T_pad, E_pad, seq_dsz, out_dsz, budget):
    """Generation-aware tile selection: lane-dense tE, multiple-of-8 tS / tT."""
    tS = S_pad if S_pad <= 512 else 512
    n128 = E_pad // 128
    e_divs = [d * 128 for d in range(n128, 0, -1) if n128 % d == 0]
    # 1) no T tiling: largest lane-dense tE that fits with the full (padded) T resident
    for tE in e_divs:
        if _fits(tS, tE, T_pad, seq_dsz, out_dsz, budget):
            return tS, tE, T_pad
    # 2) T reduction tiling: keep tE reasonably wide, shrink the T tile until it fits
    for tE in e_divs:
        if tE > 512:
            continue
        tT = 4096
        while tT >= 8:
            if tT < T_pad and _fits(tS, tE, tT, seq_dsz, out_dsz, budget):
                return tS, tE, tT
            tT //= 2
    # last-resort minimal tiles
    return tS, 128, 8


def _avg_span_kernel_single(spans_ref, seq_ref, out_ref, *, mask_dtype, precision):
    """No T tiling.  spans:(1,tS,3) i32, seq:(1,T,tE), out:(1,tS,tE)."""
    spans = spans_ref[0]                       # (tS, 3) int32
    starts = spans[:, 0:1]                     # (tS, 1)
    ends_excl = spans[:, 1:2]
    row_mask = spans[:, 2:3]

    tS = spans.shape[0]
    tT = seq_ref.shape[1]
    t_iota = lax.broadcasted_iota(jnp.int32, (tS, tT), 1)
    in_span = (t_iota >= starts) & (t_iota < ends_excl)     # exact 0/1 mask

    acc = jnp.dot(in_span.astype(mask_dtype), seq_ref[0],
                  preferred_element_type=jnp.float32, precision=precision)

    count = ends_excl - starts
    scale = row_mask.astype(jnp.float32) / jnp.maximum(count, 1).astype(jnp.float32)
    out_ref[0] = (acc * scale).astype(out_ref.dtype)


def _avg_span_kernel_ttiled(spans_ref, seq_ref, out_ref, acc_ref, *,
                            tT, mask_dtype, precision):
    """T-tiled reduction (last grid axis, 'arbitrary') with f32 VMEM accumulator."""
    t_idx = pl.program_id(3)

    @pl.when(t_idx == 0)
    def _():
        acc_ref[...] = jnp.zeros_like(acc_ref)

    spans = spans_ref[0]                       # (tS, 3) int32
    starts = spans[:, 0:1]
    ends_excl = spans[:, 1:2]

    tS = spans.shape[0]
    t0 = t_idx * tT
    t_iota = lax.broadcasted_iota(jnp.int32, (tS, tT), 1) + t0
    in_span = (t_iota >= starts) & (t_iota < ends_excl)

    acc_ref[...] += jnp.dot(in_span.astype(mask_dtype), seq_ref[0],
                            preferred_element_type=jnp.float32, precision=precision)

    @pl.when(t_idx == pl.num_programs(3) - 1)
    def _():
        row_mask = spans[:, 2:3]
        count = ends_excl - starts
        scale = row_mask.astype(jnp.float32) / jnp.maximum(count, 1).astype(jnp.float32)
        out_ref[0] = (acc_ref[...] * scale).astype(out_ref.dtype)


def average_span_extractor(sequence_tensor, span_indices, span_indices_mask=None):
    """Pallas implementation of AverageSpanExtractor.forward.

    sequence_tensor   : (B, T, E) float32 / bfloat16
    span_indices      : (B, S, 2) int   ([start, exclusive_end])
    span_indices_mask : (B, S) int / None
    returns           : (B, S, E) in sequence_tensor.dtype
    """
    B, T, E = sequence_tensor.shape
    S = span_indices.shape[1]
    seq_dtype = sequence_tensor.dtype
    seq_dsz = jnp.dtype(seq_dtype).itemsize
    out_dtype = seq_dtype
    out_dsz = jnp.dtype(out_dtype).itemsize

    cap = _vmem_capacity_bytes()
    vmem_limit = min(cap * 3 // 4, cap - (8 << 20))     # 48 MiB on v7x, 96 MiB on v5e/v6e
    budget = int(cap * 0.55)                            # tile-selection working-set target

    # Lane-dense output (tE multiple of 128), sublane-friendly S / T.
    E_pad = _round_up(E, 128)
    S_pad = _round_up(S, 8)
    T_pad0 = _round_up(T, 8)

    tS, tE, tT = _pick_tiles(S_pad, T_pad0, E_pad, seq_dsz, out_dsz, budget)
    S_pad = _round_up(S_pad, tS)
    T_pad = _round_up(T_pad0, tT)

    # Pack [start, exclusive_end, row_mask] -> one small int32 DMA per grid step.
    starts = span_indices[..., 0].astype(jnp.int32)
    ends_excl = span_indices[..., 1].astype(jnp.int32)
    if span_indices_mask is None:
        row_mask = jnp.ones((B, S), dtype=jnp.int32)
    else:
        row_mask = span_indices_mask.astype(jnp.int32)
    spans = jnp.stack([starts, ends_excl, row_mask], axis=-1)   # (B, S, 3)
    if S_pad != S:
        spans = jnp.pad(spans, ((0, 0), (0, S_pad - S), (0, 0)))

    seq = sequence_tensor
    if T_pad != T or E_pad != E:
        seq = jnp.pad(seq, ((0, 0), (0, T_pad - T), (0, E_pad - E)))

    n_st = S_pad // tS
    n_et = E_pad // tE
    n_tt = T_pad // tT

    # Exact 0/1 mask + post-matmul scaling: mask is lossless in the seq dtype.
    mask_dtype = seq_dtype
    precision = (lax.Precision.HIGHEST if seq_dtype == jnp.float32
                 else lax.Precision.DEFAULT)

    out_shape = jax.ShapeDtypeStruct((B, S_pad, E_pad), out_dtype)

    if n_tt == 1:
        kernel = functools.partial(_avg_span_kernel_single,
                                   mask_dtype=mask_dtype, precision=precision)
        grid_spec = pltpu.PrefetchScalarGridSpec(
            num_scalar_prefetch=0,
            grid=(B, n_st, n_et),
            in_specs=[
                pl.BlockSpec((1, tS, 3), lambda b, s, e: (b, s, 0)),
                pl.BlockSpec((1, tT, tE), lambda b, s, e: (b, 0, e)),
            ],
            out_specs=pl.BlockSpec((1, tS, tE), lambda b, s, e: (b, s, e)),
        )
        dim_sem = ("parallel", "parallel", "parallel")
    else:
        kernel = functools.partial(_avg_span_kernel_ttiled, tT=tT,
                                   mask_dtype=mask_dtype, precision=precision)
        grid_spec = pltpu.PrefetchScalarGridSpec(
            num_scalar_prefetch=0,
            grid=(B, n_st, n_et, n_tt),
            in_specs=[
                pl.BlockSpec((1, tS, 3), lambda b, s, e, t: (b, s, 0)),
                pl.BlockSpec((1, tT, tE), lambda b, s, e, t: (b, t, e)),
            ],
            out_specs=pl.BlockSpec((1, tS, tE), lambda b, s, e, t: (b, s, e)),
            scratch_shapes=[pltpu.VMEM((tS, tE), jnp.float32)],
        )
        dim_sem = ("parallel", "parallel", "parallel", "arbitrary")

    out = pl.pallas_call(
        kernel,
        out_shape=out_shape,
        grid_spec=grid_spec,
        compiler_params=pltpu.CompilerParams(
            dimension_semantics=dim_sem,
            vmem_limit_bytes=vmem_limit,
        ),
    )(spans, seq)

    if S_pad != S or E_pad != E:
        out = out[:, :S, :E]
    return out


def ref_average_span_extractor(sequence_tensor, span_indices, span_indices_mask=None):
    """Pure-JAX reference mirroring the PyTorch forward, for correctness checking."""
    starts = span_indices[..., 0].astype(jnp.int32)
    ends = span_indices[..., 1].astype(jnp.int32) - 1
    widths = ends - starts
    W = int(jnp.max(widths)) + 1

    j = jnp.arange(W, dtype=jnp.int32)[None, None, :]
    mask = (j <= widths[..., None]).astype(jnp.float32)
    raw = ends[..., None] - j
    mask = mask * (raw >= 0).astype(jnp.float32)
    idx = jnp.maximum(raw, 0)                                 # (B, S, W)

    emb = jax.vmap(lambda s, i: s[i])(sequence_tensor.astype(jnp.float32), idx)
    logits = jnp.where(mask > 0, 1.0, -1e32)
    wts = jax.nn.softmax(logits, axis=-1)                     # (B, S, W)
    out = jnp.einsum("bsw,bswe->bse", wts, emb)
    if span_indices_mask is not None:
        out = out * span_indices_mask[..., None].astype(out.dtype)
    return out


if __name__ == "__main__":
    key = jax.random.PRNGKey(0)
    k1, k2, k3, k4 = jax.random.split(key, 4)

    # Config 1: small masked f32 case (matches the module's typical usage).
    B, T, E, S = 2, 16, 32, 8
    sequence_tensor = jax.random.normal(k1, (B, T, E), dtype=jnp.float32)
    starts = jax.random.randint(k2, (B, S), 0, T, dtype=jnp.int32)
    widths = jax.random.randint(k3, (B, S), 0, 5, dtype=jnp.int32)
    ends_excl = jnp.minimum(starts + widths + 1, T)           # exclusive ends in [start+1, T]
    span_indices = jnp.stack([starts, ends_excl], axis=-1).astype(jnp.int32)
    span_indices_mask = (jax.random.uniform(k4, (B, S)) > 0.3).astype(jnp.int32)

    out = jax.block_until_ready(
        average_span_extractor(sequence_tensor, span_indices, span_indices_mask))
    ref = ref_average_span_extractor(sequence_tensor, span_indices, span_indices_mask)
    assert out.shape == (B, S, E)
    assert jnp.allclose(out, ref, atol=1e-5, rtol=1e-5), "f32 masked mismatch"

    # Config 2: ragged shapes exercising the S/T/E padding paths, no mask.
    B2, T2, E2, S2 = 1, 19, 160, 10
    kk = jax.random.split(jax.random.PRNGKey(1), 3)
    seq2 = jax.random.normal(kk[0], (B2, T2, E2), dtype=jnp.float32)
    st2 = jax.random.randint(kk[1], (B2, S2), 0, T2, dtype=jnp.int32)
    wd2 = jax.random.randint(kk[2], (B2, S2), 0, 7, dtype=jnp.int32)
    en2 = jnp.minimum(st2 + wd2 + 1, T2)
    si2 = jnp.stack([st2, en2], axis=-1).astype(jnp.int32)

    out2 = jax.block_until_ready(average_span_extractor(seq2, si2, None))
    ref2 = ref_average_span_extractor(seq2, si2, None)
    assert out2.shape == (B2, S2, E2)
    assert jnp.allclose(out2, ref2, atol=1e-5, rtol=1e-5), "ragged mismatch"

    # Config 3: bf16 end-to-end (exact 0/1 mask, single-pass MXU) — loose tolerance.
    out_bf = jax.block_until_ready(
        average_span_extractor(sequence_tensor.astype(jnp.bfloat16),
                               span_indices, span_indices_mask))
    assert out_bf.dtype == jnp.bfloat16
    assert jnp.allclose(out_bf.astype(jnp.float32), ref, atol=3e-2, rtol=3e-2), "bf16 mismatch"

    print("KERNEL_OK")
</pallas_src>

<mosaic_0001>
module attributes {stable_mosaic.version = 11 : i64} {
  func.func @_avg_span_kernel_single(%arg0: i32, %arg1: i32, %arg2: i32, %arg3: memref<1x8x3xi32, #tpu.memory_space<vmem>>, %arg4: memref<1x16x128xf32, #tpu.memory_space<vmem>>, %arg5: memref<1x8x128xf32, #tpu.memory_space<vmem>>) attributes {dimension_semantics = [#tpu.dimension_semantics<parallel>, #tpu.dimension_semantics<parallel>, #tpu.dimension_semantics<parallel>], iteration_bounds = array<i64: 2, 1, 1>, scalar_prefetch = 0 : i64, scratch_operands = 0 : i64, tpu.core_type = #tpu.core_type<tc>, window_params = [{transform_indices = @transform_0, window_bounds = array<i64: 1, 8, 3>}, {transform_indices = @transform_1, window_bounds = array<i64: 1, 16, 128>}, {transform_indices = @transform_2, window_bounds = array<i64: 1, 8, 128>}]} {
    %c0 = arith.constant 0 : index
    %c0_0 = arith.constant 0 : index
    %c0_1 = arith.constant 0 : index
    %0 = vector.load %arg3[%c0, %c0_0, %c0_1] : memref<1x8x3xi32, #tpu.memory_space<vmem>>, vector<1x8x3xi32>
    %1 = vector.shape_cast %0 : vector<1x8x3xi32> to vector<8x3xi32>
    %2 = vector.extract_strided_slice %1 {offsets = [0, 0], sizes = [8, 1], strides = [1, 1]} : vector<8x3xi32> to vector<8x1xi32>
    %3 = vector.extract_strided_slice %1 {offsets = [0, 1], sizes = [8, 1], strides = [1, 1]} : vector<8x3xi32> to vector<8x1xi32>
    %4 = vector.extract_strided_slice %1 {offsets = [0, 2], sizes = [8, 1], strides = [1, 1]} : vector<8x3xi32> to vector<8x1xi32>
    %5 = tpu.iota {dimensions = array<i32: 1>} : vector<8x16xi32>
    %6 = vector.broadcast %2 : vector<8x1xi32> to vector<8x16xi32>
    %7 = arith.cmpi sge, %5, %6 : vector<8x16xi32>
    %8 = vector.broadcast %3 : vector<8x1xi32> to vector<8x16xi32>
    %9 = arith.cmpi slt, %5, %8 : vector<8x16xi32>
    %10 = arith.andi %7, %9 : vector<8x16xi1>
    %11 = arith.extui %10 : vector<8x16xi1> to vector<8x16xi32>
    %12 = arith.sitofp %11 : vector<8x16xi32> to vector<8x16xf32>
    %c0_2 = arith.constant 0 : index
    %c0_3 = arith.constant 0 : index
    %c0_4 = arith.constant 0 : index
    %13 = vector.load %arg4[%c0_2, %c0_3, %c0_4] : memref<1x16x128xf32, #tpu.memory_space<vmem>>, vector<1x16x128xf32>
    %14 = vector.shape_cast %13 : vector<1x16x128xf32> to vector<16x128xf32>
    %cst = arith.constant dense<0.000000e+00> : vector<8x128xf32>
    %15 = tpu.matmul %12, %14, %cst {dimension_numbers = #tpu.dot_dimension_numbers<[1], [0], [0], [1], [0, 0, 1, 1], [], []>, precision = #tpu.contract_precision<fp32>} : vector<8x16xf32>, vector<16x128xf32>, vector<8x128xf32> -> vector<8x128xf32>
    %16 = arith.subi %3, %2 : vector<8x1xi32>
    %17 = arith.sitofp %4 : vector<8x1xi32> to vector<8x1xf32>
    %c1_i32 = arith.constant 1 : i32
    %18 = vector.broadcast %c1_i32 : i32 to vector<8x1xi32>
    %19 = arith.maxsi %16, %18 : vector<8x1xi32>
    %20 = arith.sitofp %19 : vector<8x1xi32> to vector<8x1xf32>
    %21 = arith.divf %17, %20 : vector<8x1xf32>
    %22 = vector.broadcast %21 : vector<8x1xf32> to vector<8x128xf32>
    %23 = arith.mulf %15, %22 : vector<8x128xf32>
    %c0_5 = arith.constant 0 : index
    %c0_6 = arith.constant 0 : index
    %c0_7 = arith.constant 0 : index
    %24 = vector.load %arg5[%c0_5, %c0_6, %c0_7] : memref<1x8x128xf32, #tpu.memory_space<vmem>>, vector<1x8x128xf32>
    %25 = vector.shape_cast %24 : vector<1x8x128xf32> to vector<8x128xf32>
    %26 = vector.shape_cast %23 : vector<8x128xf32> to vector<1x8x128xf32>
    tpu.vector_store %arg5[%c0_5, %c0_6, %c0_7], %26 {strides = array<i32>} : memref<1x8x128xf32, #tpu.memory_space<vmem>>, vector<1x8x128xf32>,
    return
  }
  func.func @transform_0(%arg0: i32, %arg1: i32, %arg2: i32) -> (i32, i32, i32) {
    %c0_i32 = arith.constant 0 : i32
    %c0_i32_0 = arith.constant 0 : i32
    return %arg0, %arg1, %c0_i32 : i32, i32, i32
  }
  func.func @transform_1(%arg0: i32, %arg1: i32, %arg2: i32) -> (i32, i32, i32) {
    %c0_i32 = arith.constant 0 : i32
    %c0_i32_0 = arith.constant 0 : i32
    return %arg0, %c0_i32, %arg2 : i32, i32, i32
  }
  func.func @transform_2(%arg0: i32, %arg1: i32, %arg2: i32) -> (i32, i32, i32) {
    %c0_i32 = arith.constant 0 : i32
    return %arg0, %arg1, %arg2 : i32, i32, i32
  }
}

</mosaic_0001>

<llo_original>
// kernel: tpu_custom_call.1
$region0: #{tpu_custom_call.1}
  #allocation0 [shape = 'u32[]', space=smem, size = 0x4, offset = 0x4, fixed_abs, tag = 'smem constant byte address 0x4 - core index']
  #allocation1 [shape = 'u32[144,128]{1,0:T(1,128)}', space=vmem, size = 0x12000, scoped, tag = 'internal scratch']
  %s0 = inlined_call_operand.vmem [shape: s32[2,8,3], index: 0, kind: input, shape index: {}]
  %s1 = inlined_call_operand.hbm [shape: f32[2,16,128], index: 1, kind: input, shape index: {}]
  %s2 = inlined_call_operand.hbm [shape: f32[2,8,128], index: 2, kind: output, shape index: {}]
  %s3 = sld [smem:[#allocation0]]
  $region45: #{tpu_custom_call.1} parent=0
    _
  %s5 = ssub.s32 1, %s3
  %s6 = scalar_select 0, %s5, %s3
  $region1: #{tpu_custom_call.1} parent=0
    #allocation2 [shape = 'u8[16384]{0}', space=vmem, size = 0x4000, scoped, tag = 'input window, operand 1']
    #allocation3 [shape = 's32[2]{0}', space=sflag, size = 0x8, scoped, tag = 'scoped memory for tpu_custom_call.1']
    #allocation4 [shape = 's32[2]{0}', space=sflag, size = 0x8, scoped, tag = 'scoped memory for tpu_custom_call.1']
    #allocation5 [shape = 'u8[8192]{0}', space=vmem, size = 0x2000, scoped, tag = 'output window, operand 0']
    %7 = vsyncpa [#allocation3], 0
    %s8 = scalar_lea.sflag [#allocation3], 1
    %9 = vsyncpa %s8, 0
    %10 = vsyncpa [#allocation4], 0
    %s11 = scalar_lea.sflag [#allocation4], 1
    %12 = vsyncpa %s11, 0
    loop: start=0, step=1, limit=4
    $region2: #{tpu_custom_call.1} parent=1 // loop_pre_header
      _
    $region3: #{tpu_custom_call.1} parent=1 // loop_header
      %s14 = sphi 0, %s18
      %p15 = scmp.ge.s32.totalorder %s14, 4
      %s21 = sphi 0, %s40
      %s22 = sphi 0, %s36
      %s23 = sphi 0, %s32
      %s24 = sphi 0, %s21
      %s25 = sphi 0, %s22
      %s26 = sphi 0, %s23
      %s27 = sphi 0, %s24
      %s28 = sphi 0, %s25
      %s29 = sphi 0, %s26
      %s45 = sphi 0, %s47
      %s48 = sphi 0, %s45
      %s49 = sphi 0, %s48
      %s65 = sphi 0, %s49
      %s73 = sphi 0, %s75
      %s76 = sphi 0, %s73
      %s77 = sphi 0, %s76
      %s93 = sphi 0, %s77
      %s103 = sphi 0, %s105
      %s106 = sphi 0, %s103
      %s107 = sphi 0, %s106
      %s123 = sphi 0, %s107
    $region4: #{tpu_custom_call.1} parent=1 // loop_header_branch
      %17 = sbr.rel (%p15) target = $region8
    $region5: #{tpu_custom_call.1} parent=1 // loop_body
      %s19 = ssub.s32 %s14, 1
      %s20 = ssub.s32 %s14, 2
      %s30 = sadd.s32 1, %s23
      %p31 = scmp.ge.s32.totalorder %s30, 1
      %s32 = scalar_select %p31, 0, %s30
      %s33 = sadd.s32 1, %s22
      %s34 = scalar_select %p31, %s33, %s22
      %p35 = scmp.ge.s32.totalorder %s34, 1
      %s36 = scalar_select %p35, 0, %s34
      %s37 = sadd.s32 1, %s21
      %s38 = scalar_select %p35, %s37, %s21
      %p39 = scmp.ge.s32.totalorder %s38, 2
      %s40 = scalar_select %p39, 0, %s38
      %s41 = ssub.s32 %s21, %s40
      %s42 = ssub.s32 %s22, %s36
      %s43 = sor.u32 %s41, %s42
      %p44 = scmp.eq.s32.totalorder %s43, 0
      %s46 = sadd.s32 %s45, 1
      %s47 = scalar_select %p44, %s45, %s46
      %p50 = pneg %p44
      %p51 = scmp.eq.s32.totalorder %s14, 1
      %p52 = por %p50, %p51
      %p53 = scmp.ne.s32.totalorder %s45, %s48
      %p54 = scmp.eq.s32.totalorder %s14, 0
      %p55 = por %p53, %p54
      %p56 = scmp.ne.s32.totalorder %s45, %s48
      %p57 = scmp.eq.s32.totalorder %s19, 1
      %p58 = por %p56, %p57
      %p59 = scmp.ne.s32.totalorder %s48, %s49
      %p60 = scmp.eq.s32.totalorder %s19, 0
      %p61 = por %p59, %p60
      %p62 = scmp.ne.s32.totalorder %s48, %s49
      %p63 = scmp.eq.s32.totalorder %s20, 1
      %p64 = por %p62, %p63
      %p66 = scmp.ne.s32.totalorder %s49, %s65
      %p67 = scmp.eq.s32.totalorder %s20, 0
      %p68 = por %p66, %p67
      %s69 = ssub.s32 %s21, %s40
      %s70 = ssub.s32 %s23, %s32
      %s71 = sor.u32 %s69, %s70
      %p72 = scmp.eq.s32.totalorder %s71, 0
      %s74 = sadd.s32 %s73, 1
      %s75 = scalar_select %p72, %s73, %s74
      %p78 = pneg %p72
      %p79 = scmp.eq.s32.totalorder %s14, 1
      %p80 = por %p78, %p79
      %p81 = scmp.ne.s32.totalorder %s73, %s76
      %p82 = scmp.eq.s32.totalorder %s14, 0
      %p83 = por %p81, %p82
      %p84 = scmp.ne.s32.totalorder %s73, %s76
      %p85 = scmp.eq.s32.totalorder %s19, 1
      %p86 = por %p84, %p85
      %p87 = scmp.ne.s32.totalorder %s76, %s77
      %p88 = scmp.eq.s32.totalorder %s19, 0
      %p89 = por %p87, %p88
      %p90 = scmp.ne.s32.totalorder %s76, %s77
      %p91 = scmp.eq.s32.totalorder %s20, 1
      %p92 = por %p90, %p91
      %p94 = scmp.ne.s32.totalorder %s77, %s93
      %p95 = scmp.eq.s32.totalorder %s20, 0
      %p96 = por %p94, %p95
      %s97 = ssub.s32 %s21, %s40
      %s98 = ssub.s32 %s22, %s36
      %s99 = sor.u32 %s97, %s98
      %s100 = ssub.s32 %s23, %s32
      %s101 = sor.u32 %s99, %s100
      %p102 = scmp.eq.s32.totalorder %s101, 0
      %s104 = sadd.s32 %s103, 1
      %s105 = scalar_select %p102, %s103, %s104
      %p108 = pneg %p102
      %p109 = scmp.eq.s32.totalorder %s14, 1
      %p110 = por %p108, %p109
      %p111 = scmp.ne.s32.totalorder %s103, %s106
      %p112 = scmp.eq.s32.totalorder %s14, 0
      %p113 = por %p111, %p112
      %p114 = scmp.ne.s32.totalorder %s103, %s106
      %p115 = scmp.eq.s32.totalorder %s19, 1
      %p116 = por %p114, %p115
      %p117 = scmp.ne.s32.totalorder %s106, %s107
      %p118 = scmp.eq.s32.totalorder %s19, 0
      %p119 = por %p117, %p118
      %p120 = scmp.ne.s32.totalorder %s106, %s107
      %p121 = scmp.eq.s32.totalorder %s20, 1
      %p122 = por %p120, %p121
      %p124 = scmp.ne.s32.totalorder %s107, %s123
      %p125 = scmp.eq.s32.totalorder %s20, 0
      %p126 = por %p124, %p125
      %p127 = scmp.le.s32.totalorder 1, %s14
      %p128 = scmp.lt.s32.totalorder %s14, 3
      %p129 = pnand %p127, %p128
      %p130 = pneg %p129
      // Predicated region
      $region9: #{tpu_custom_call.1} parent=5 // pred_check
        _
      $region10: #{tpu_custom_call.1} parent=5 // pred_check_branch
        %132 = sbr.rel (%p129) target = $region12
      $region11: #{tpu_custom_call.1} parent=5 // pred_region
        %s133 = ssub.s32 %s14, 1
      $region12: #{tpu_custom_call.1} parent=5 // pred_fallthru
        _
      %p134 = scmp.lt.s32.totalorder %s14, 2
      // Predicated region
      $region13: #{tpu_custom_call.1} parent=5 // pred_check
        %p135 = pneg %p134
      $region14: #{tpu_custom_call.1} parent=5 // pred_check_branch
        %137 = sbr.rel (%p135) target = $region16
      $region15: #{tpu_custom_call.1} parent=5 // pred_region
        // Predicated region
        $region17: #{tpu_custom_call.1} parent=15 // pred_check
          %p138 = pneg %p55
        $region18: #{tpu_custom_call.1} parent=15 // pred_check_branch
          %140 = sbr.rel (%p138) target = $region20
        $region19: #{tpu_custom_call.1} parent=15 // pred_region
          %p141 = scmp.lt.s32.totalorder %s21, 1
          %s142 = scalar_select %p141, %s21, 1
          %p143 = scmp.lt.s32.totalorder %s22, 0
          %s144 = scalar_select %p143, %s22, 0
          %s145 = sadd.s32 %s144, %s142
          %s146 = smul.addr %s145, 8
          %s147 = scalar_lea.vmem %s0, %s146
        $region20: #{tpu_custom_call.1} parent=15 // pred_fallthru
          _
        // Predicated region
        $region21: #{tpu_custom_call.1} parent=15 // pred_check
          %p148 = pneg %p83
        $region22: #{tpu_custom_call.1} parent=15 // pred_check_branch
          %150 = sbr.rel (%p148) target = $region24
        $region23: #{tpu_custom_call.1} parent=15 // pred_region
          %s151 = sand.u32 %s73, 1
          %s152 = scalar_lea.sflag [#allocation3], %s151
          %s153 = sand.u32 %s73, 1
          %s154 = smul.addr %s153, 16
          %s155 = scalar_lea.vmem [#allocation2], %s154
          %s157 = ssub.s32 256, 256
          %158 = vsyncadd %s152, %s157
          %s159 = smul.addr %s21, 2
          %s160 = sadd.s32 %s23, %s159
          %s161 = smul.addr %s160, 128
          %s162 = scalar_lea.hbm %s1, %s161
          %s163 = sshll.u32 %s155, 4
          %s164 = int_to_ptr.vmem [resolvable:$true] %s163
          %169 = dma.hbm_to_vmem [thread:$0]  %s162, 256, %s164, %s152, 128, 128, 8
        $region24: #{tpu_custom_call.1} parent=15 // pred_fallthru
          _
      $region16: #{tpu_custom_call.1} parent=5 // pred_fallthru
        _
      %p170 = scmp.le.s32.totalorder 1, %s14
      %p171 = scmp.lt.s32.totalorder %s14, 3
      %p172 = pnand %p170, %p171
      %p173 = pneg %p172
      // Predicated region
      $region25: #{tpu_custom_call.1} parent=5 // pred_check
        _
      $region26: #{tpu_custom_call.1} parent=5 // pred_check_branch
        %175 = sbr.rel (%p172) target = $region28
      $region27: #{tpu_custom_call.1} parent=5 // pred_region
        %s176 = ssub.s32 %s14, 1
        %s177 = sand.u32 %s76, 1
        %s178 = scalar_lea.sflag [#allocation3], %s177
        %s179 = sand.u32 %s76, 1
        %s180 = smul.addr %s179, 16
        %s181 = scalar_lea.vmem [#allocation2], %s180
        // Predicated region
        $region29: #{tpu_custom_call.1} parent=27 // pred_check
          %p182 = pneg %p89
        $region30: #{tpu_custom_call.1} parent=27 // pred_check_branch
          %184 = sbr.rel (%p182) target = $region32
        $region31: #{tpu_custom_call.1} parent=27 // pred_region
          %185 = dma.done %s178, 256
        $region32: #{tpu_custom_call.1} parent=27 // pred_fallthru
          _
        %p186 = scmp.lt.s32.totalorder %s24, 1
        %s187 = scalar_select %p186, %s24, 1
        %p188 = scmp.lt.s32.totalorder %s25, 0
        %s189 = scalar_select %p188, %s25, 0
        %s190 = sadd.s32 %s189, %s187
        %s191 = smul.addr %s190, 8
        %s192 = scalar_lea.vmem %s0, %s191
        %p193 = pneg %p61
        %p194 = pneg %p58
        %s195 = sand.u32 %s76, 1
        %s196 = scalar_lea.sflag [#allocation3], %s195
        %s197 = sand.u32 %s76, 1
        %s198 = smul.addr %s197, 16
        %s199 = scalar_lea.vmem [#allocation2], %s198
        %p200 = pneg %p89
        %p201 = pneg %p86
        %p202 = pneg %p119
        %p203 = pneg %p116
        %s204 = sand.u32 %s106, 1
        %s205 = scalar_lea.sflag [#allocation4], %s204
        %s206 = sand.u32 %s106, 1
        %s207 = smul.addr %s206, 8
        %s208 = scalar_lea.vmem [#allocation5], %s207
        %p209 = scmp.lt.s32.totalorder %s24, 1
        %s210 = scalar_select %p209, %s24, 1
        %p211 = scmp.lt.s32.totalorder %s25, 0
        %s212 = scalar_select %p211, %s25, 0
        %s213 = sadd.s32 %s212, %s210
        %s214 = smul.addr %s213, 8
        %s215 = scalar_lea.vmem %s0, %s214
        %v216 = vld [vmem:[%s215] sm:$0xff]
        %v217 = vlaneseq
        %v218 = vand.u32 %v217, 127
        %219 = vset.pattern.permute.xlu0 0
        %220 = vperm.xlu0 %219, %v216
        %v221 = vpop.permute.xlu0 %220
        %vm222 = vcmp.ge.s32.totalorder %v218, %v221
        %223 = vset.pattern.permute.xlu0 1
        %224 = vperm.xlu0 %223, %v216
        %v225 = vpop.permute.xlu0 %224
        %vm226 = vcmp.lt.s32.totalorder %v218, %v225
        %vm227 = vmand %vm222, %vm226
        %v228 = vsel %vm227, 1, 0
        %v229 = vcvt.s32.f32 %v228
        %v230 = vld [vmem:[%s181] sm:$0xff]
        %v231 = vld [vmem:[%s181 + $0x8] sm:$0xff]
        %vm232 = vcmask 130048
        %v234 = vsel %vm232, %v229, 0
        %236 = vmatprep.subr.mxu0 0.0
        %v237 = vand.u32 %v230, 4294901760
        %238 = vmatpush1.msra.mxu0 %v237
        %239 = vmatprep.subr.mxu0 0.0
        %v240 = vand.u32 %v231, 4294901760
        %241 = vmatpush1.msra.mxu0 %v240
        %242 = vmatprep.subr.mxu0 0.0
        %243 = vmatpush1.msra.mxu0 0.0
        %244 = vmatprep.subr.mxu0 0.0
        %245 = vmatpush1.msra.mxu0 0.0
        %246 = vmatprep.subr.mxu0 0.0
        %247 = vmatpush1.msra.mxu0 0.0
        %248 = vmatprep.subr.mxu0 0.0
        %249 = vmatpush1.msra.mxu0 0.0
        %250 = vmatprep.subr.mxu0 0.0
        %251 = vmatpush1.msra.mxu0 0.0
        %252 = vmatprep.subr.mxu0 0.0
        %253 = vmatpush1.msra.mxu0 0.0
        %254 = vmatprep.subr.mxu0 0.0
        %255 = vmatpush1.msra.mxu0 0.0
        %256 = vmatprep.subr.mxu0 0.0
        %257 = vmatpush1.msra.mxu0 0.0
        %258 = vmatprep.subr.mxu0 0.0
        %259 = vmatpush1.msra.mxu0 0.0
        %260 = vmatprep.subr.mxu0 0.0
        %261 = vmatpush1.msra.mxu0 0.0
        %262 = vmatprep.subr.mxu0 0.0
        %263 = vmatpush1.msra.mxu0 0.0
        %264 = vmatprep.subr.mxu0 0.0
        %265 = vmatpush1.msra.mxu0 0.0
        %266 = vmatprep.subr.mxu0 0.0
        %267 = vmatpush1.msra.mxu0 0.0
        %268 = vmatprep.subr.mxu0 0.0
        %269 = vmatpush1.msra.mxu0 0.0
        %270 = vmatprep.subr.mxu0 0.0
        %271 = vmatpush1.msra.mxu0 0.0
        %272 = vmatprep.subr.mxu0 0.0
        %273 = vmatpush1.msra.mxu0 0.0
        %274 = vmatprep.subr.mxu0 0.0
        %275 = vmatpush1.msra.mxu0 0.0
        %276 = vmatprep.subr.mxu0 0.0
        %277 = vmatpush1.msra.mxu0 0.0
        %278 = vmatprep.subr.mxu0 0.0
        %279 = vmatpush1.msra.mxu0 0.0
        %280 = vmatprep.subr.mxu0 0.0
        %281 = vmatpush1.msra.mxu0 0.0
        %282 = vmatprep.subr.mxu0 0.0
        %283 = vmatpush1.msra.mxu0 0.0
        %284 = vmatprep.subr.mxu0 0.0
        %285 = vmatpush1.msra.mxu0 0.0
        %286 = vmatprep.subr.mxu0 0.0
        %287 = vmatpush1.msra.mxu0 0.0
        %288 = vmatprep.subr.mxu0 0.0
        %289 = vmatpush1.msra.mxu0 0.0
        %290 = vmatprep.subr.mxu0 0.0
        %291 = vmatpush1.msra.mxu0 0.0
        %292 = vmatprep.subr.mxu0 0.0
        %293 = vmatpush1.msra.mxu0 0.0
        %294 = vmatprep.subr.mxu0 0.0
        %295 = vmatpush1.msra.mxu0 0.0
        %296 = vmatprep.subr.mxu0 0.0
        %297 = vmatpush1.msra.mxu0 0.0
        %298 = vmatprep.subr.mxu0 0.0
        %299 = vmatpush1.msra.mxu0 0.0
        %300 = vmatprep.subr.mxu0 0.0
        %301 = vmatpush1.msra.mxu0 0.0
        %302 = vmatprep.mubr.f32.mxu0 0.0
        %v303 = vand.u32 %v234, 4294901760
        %v304 = vsub.f32 %v234, %v303
        %v305 = vand.u32 %v304, 4294901760
        %v306 = vsub.f32 %v304, %v305
        %v307 = vand.u32 %v306, 4294901760
        %308 = vmatmul.mubr.f32.gmra.mrb[0].mxu0 %v307
        %v309 = vpop.f32.mrb[0].mxu0
        %v310 = vadd.f32 0.0, %v309
        %v311 = vpop.f32.mrb[0].mxu0
        %312 = vdwg.mxu0
        %313 = vmatprep.subr.mxu0 0.0
        %v314 = vand.u32 %v230, 4294901760
        %v315 = vsub.f32 %v230, %v314
        %v316 = vand.u32 %v315, 4294901760
        %v317 = vsub.f32 %v315, %v316
        %v318 = vand.u32 %v317, 4294901760
        %319 = vmatpush1.msra.mxu0 %v318
        %320 = vmatprep.subr.mxu0 0.0
        %v321 = vand.u32 %v231, 4294901760
        %v322 = vsub.f32 %v231, %v321
        %v323 = vand.u32 %v322, 4294901760
        %v324 = vsub.f32 %v322, %v323
        %v325 = vand.u32 %v324, 4294901760
        %326 = vmatpush1.msra.mxu0 %v325
        %327 = vmatprep.subr.mxu0 0.0
        %328 = vmatpush1.msra.mxu0 0.0
        %329 = vmatprep.subr.mxu0 0.0
        %330 = vmatpush1.msra.mxu0 0.0
        %331 = vmatprep.subr.mxu0 0.0
        %332 = vmatpush1.msra.mxu0 0.0
        %333 = vmatprep.subr.mxu0 0.0
        %334 = vmatpush1.msra.mxu0 0.0
        %335 = vmatprep.subr.mxu0 0.0
        %336 = vmatpush1.msra.mxu0 0.0
        %337 = vmatprep.subr.mxu0 0.0
        %338 = vmatpush1.msra.mxu0 0.0
        %339 = vmatprep.subr.mxu0 0.0
        %340 = vmatpush1.msra.mxu0 0.0
        %341 = vmatprep.subr.mxu0 0.0
        %342 = vmatpush1.msra.mxu0 0.0
        %343 = vmatprep.subr.mxu0 0.0
        %344 = vmatpush1.msra.mxu0 0.0
        %345 = vmatprep.subr.mxu0 0.0
        %346 = vmatpush1.msra.mxu0 0.0
        %347 = vmatprep.subr.mxu0 0.0
        %348 = vmatpush1.msra.mxu0 0.0
        %349 = vmatprep.subr.mxu0 0.0
        %350 = vmatpush1.msra.mxu0 0.0
        %351 = vmatprep.subr.mxu0 0.0
        %352 = vmatpush1.msra.mxu0 0.0
        %353 = vmatprep.subr.mxu0 0.0
        %354 = vmatpush1.msra.mxu0 0.0
        %355 = vmatprep.subr.mxu0 0.0
        %356 = vmatpush1.msra.mxu0 0.0
        %357 = vmatprep.subr.mxu0 0.0
        %358 = vmatpush1.msra.mxu0 0.0
        %359 = vmatprep.subr.mxu0 0.0
        %360 = vmatpush1.msra.mxu0 0.0
        %361 = vmatprep.subr.mxu0 0.0
        %362 = vmatpush1.msra.mxu0 0.0
        %363 = vmatprep.subr.mxu0 0.0
        %364 = vmatpush1.msra.mxu0 0.0
        %365 = vmatprep.subr.mxu0 0.0
        %366 = vmatpush1.msra.mxu0 0.0
        %367 = vmatprep.subr.mxu0 0.0
        %368 = vmatpush1.msra.mxu0 0.0
        %369 = vmatprep.subr.mxu0 0.0
        %370 = vmatpush1.msra.mxu0 0.0
        %371 = vmatprep.subr.mxu0 0.0
        %372 = vmatpush1.msra.mxu0 0.0
        %373 = vmatprep.subr.mxu0 0.0
        %374 = vmatpush1.msra.mxu0 0.0
        %375 = vmatprep.subr.mxu0 0.0
        %376 = vmatpush1.msra.mxu0 0.0
        %377 = vmatprep.subr.mxu0 0.0
        %378 = vmatpush1.msra.mxu0 0.0
        %379 = vmatprep.subr.mxu0 0.0
        %380 = vmatpush1.msra.mxu0 0.0
        %381 = vmatprep.subr.mxu0 0.0
        %382 = vmatpush1.msra.mxu0 0.0
        %383 = vmatprep.subr.mxu0 0.0
        %384 = vmatpush1.msra.mxu0 0.0
        %385 = vmatprep.subr.mxu0 0.0
        %386 = vmatpush1.msra.mxu0 0.0
        %387 = vmatprep.mubr.f32.mxu0 0.0
        %v388 = vand.u32 %v234, 4294901760
        %389 = vmatmul.mubr.f32.gmra.mrb[0].mxu0 %v388
        %v390 = vpop.f32.mrb[0].mxu0
        %v391 = vadd.f32 %v310, %v390
        %v392 = vpop.f32.mrb[0].mxu0
        %393 = vdwg.mxu0
        %394 = vmatprep.subr.mxu0 0.0
        %v395 = vand.u32 %v230, 4294901760
        %v396 = vsub.f32 %v230, %v395
        %397 = vmatpush1.msra.mxu0 %v396
        %398 = vmatprep.subr.mxu0 0.0
        %v399 = vand.u32 %v231, 4294901760
        %v400 = vsub.f32 %v231, %v399
        %401 = vmatpush1.msra.mxu0 %v400
        %402 = vmatprep.subr.mxu0 0.0
        %403 = vmatpush1.msra.mxu0 0.0
        %404 = vmatprep.subr.mxu0 0.0
        %405 = vmatpush1.msra.mxu0 0.0
        %406 = vmatprep.subr.mxu0 0.0
        %407 = vmatpush1.msra.mxu0 0.0
        %408 = vmatprep.subr.mxu0 0.0
        %409 = vmatpush1.msra.mxu0 0.0
        %410 = vmatprep.subr.mxu0 0.0
        %411 = vmatpush1.msra.mxu0 0.0
        %412 = vmatprep.subr.mxu0 0.0
        %413 = vmatpush1.msra.mxu0 0.0
        %414 = vmatprep.subr.mxu0 0.0
        %415 = vmatpush1.msra.mxu0 0.0
        %416 = vmatprep.subr.mxu0 0.0
        %417 = vmatpush1.msra.mxu0 0.0
        %418 = vmatprep.subr.mxu0 0.0
        %419 = vmatpush1.msra.mxu0 0.0
        %420 = vmatprep.subr.mxu0 0.0
        %421 = vmatpush1.msra.mxu0 0.0
        %422 = vmatprep.subr.mxu0 0.0
        %423 = vmatpush1.msra.mxu0 0.0
        %424 = vmatprep.subr.mxu0 0.0
        %425 = vmatpush1.msra.mxu0 0.0
        %426 = vmatprep.subr.mxu0 0.0
        %427 = vmatpush1.msra.mxu0 0.0
        %428 = vmatprep.subr.mxu0 0.0
        %429 = vmatpush1.msra.mxu0 0.0
        %430 = vmatprep.subr.mxu0 0.0
        %431 = vmatpush1.msra.mxu0 0.0
        %432 = vmatprep.subr.mxu0 0.0
        %433 = vmatpush1.msra.mxu0 0.0
        %434 = vmatprep.subr.mxu0 0.0
        %435 = vmatpush1.msra.mxu0 0.0
        %436 = vmatprep.subr.mxu0 0.0
        %437 = vmatpush1.msra.mxu0 0.0
        %438 = vmatprep.subr.mxu0 0.0
        %439 = vmatpush1.msra.mxu0 0.0
        %440 = vmatprep.subr.mxu0 0.0
        %441 = vmatpush1.msra.mxu0 0.0
        %442 = vmatprep.subr.mxu0 0.0
        %443 = vmatpush1.msra.mxu0 0.0
        %444 = vmatprep.subr.mxu0 0.0
        %445 = vmatpush1.msra.mxu0 0.0
        %446 = vmatprep.subr.mxu0 0.0
        %447 = vmatpush1.msra.mxu0 0.0
        %448 = vmatprep.subr.mxu0 0.0
        %449 = vmatpush1.msra.mxu0 0.0
        %450 = vmatprep.subr.mxu0 0.0
        %451 = vmatpush1.msra.mxu0 0.0
        %452 = vmatprep.subr.mxu0 0.0
        %453 = vmatpush1.msra.mxu0 0.0
        %454 = vmatprep.subr.mxu0 0.0
        %455 = vmatpush1.msra.mxu0 0.0
        %456 = vmatprep.subr.mxu0 0.0
        %457 = vmatpush1.msra.mxu0 0.0
        %458 = vmatprep.subr.mxu0 0.0
        %459 = vmatpush1.msra.mxu0 0.0
        %460 = vmatprep.subr.mxu0 0.0
        %461 = vmatpush1.msra.mxu0 0.0
        %462 = vmatprep.mubr.f32.mxu0 0.0
        %v463 = vand.u32 %v234, 4294901760
        %v464 = vsub.f32 %v234, %v463
        %465 = vmatmul.mubr.f32.gmra.mrb[0].mxu0 %v464
        %v466 = vpop.f32.mrb[0].mxu0
        %v467 = vadd.f32 %v391, %v466
        %v468 = vpop.f32.mrb[0].mxu0
        %469 = vdwg.mxu0
        %470 = vmatprep.subr.mxu0 0.0
        %v471 = vand.u32 %v230, 4294901760
        %472 = vmatpush1.msra.mxu0 %v471
        %473 = vmatprep.subr.mxu0 0.0
        %v474 = vand.u32 %v231, 4294901760
        %475 = vmatpush1.msra.mxu0 %v474
        %476 = vmatprep.subr.mxu0 0.0
        %477 = vmatpush1.msra.mxu0 0.0
        %478 = vmatprep.subr.mxu0 0.0
        %479 = vmatpush1.msra.mxu0 0.0
        %480 = vmatprep.subr.mxu0 0.0
        %481 = vmatpush1.msra.mxu0 0.0
        %482 = vmatprep.subr.mxu0 0.0
        %483 = vmatpush1.msra.mxu0 0.0
        %484 = vmatprep.subr.mxu0 0.0
        %485 = vmatpush1.msra.mxu0 0.0
        %486 = vmatprep.subr.mxu0 0.0
        %487 = vmatpush1.msra.mxu0 0.0
        %488 = vmatprep.subr.mxu0 0.0
        %489 = vmatpush1.msra.mxu0 0.0
        %490 = vmatprep.subr.mxu0 0.0
        %491 = vmatpush1.msra.mxu0 0.0
        %492 = vmatprep.subr.mxu0 0.0
        %493 = vmatpush1.msra.mxu0 0.0
        %494 = vmatprep.subr.mxu0 0.0
        %495 = vmatpush1.msra.mxu0 0.0
        %496 = vmatprep.subr.mxu0 0.0
        %497 = vmatpush1.msra.mxu0 0.0
        %498 = vmatprep.subr.mxu0 0.0
        %499 = vmatpush1.msra.mxu0 0.0
        %500 = vmatprep.subr.mxu0 0.0
        %501 = vmatpush1.msra.mxu0 0.0
        %502 = vmatprep.subr.mxu0 0.0
        %503 = vmatpush1.msra.mxu0 0.0
        %504 = vmatprep.subr.mxu0 0.0
        %505 = vmatpush1.msra.mxu0 0.0
        %506 = vmatprep.subr.mxu0 0.0
        %507 = vmatpush1.msra.mxu0 0.0
        %508 = vmatprep.subr.mxu0 0.0
        %509 = vmatpush1.msra.mxu0 0.0
        %510 = vmatprep.subr.mxu0 0.0
        %511 = vmatpush1.msra.mxu0 0.0
        %512 = vmatprep.subr.mxu0 0.0
        %513 = vmatpush1.msra.mxu0 0.0
        %514 = vmatprep.subr.mxu0 0.0
        %515 = vmatpush1.msra.mxu0 0.0
        %516 = vmatprep.subr.mxu0 0.0
        %517 = vmatpush1.msra.mxu0 0.0
        %518 = vmatprep.subr.mxu0 0.0
        %519 = vmatpush1.msra.mxu0 0.0
        %520 = vmatprep.subr.mxu0 0.0
        %521 = vmatpush1.msra.mxu0 0.0
        %522 = vmatprep.subr.mxu0 0.0
        %523 = vmatpush1.msra.mxu0 0.0
        %524 = vmatprep.subr.mxu0 0.0
        %525 = vmatpush1.msra.mxu0 0.0
        %526 = vmatprep.subr.mxu0 0.0
        %527 = vmatpush1.msra.mxu0 0.0
        %528 = vmatprep.subr.mxu0 0.0
        %529 = vmatpush1.msra.mxu0 0.0
        %530 = vmatprep.subr.mxu0 0.0
        %531 = vmatpush1.msra.mxu0 0.0
        %532 = vmatprep.subr.mxu0 0.0
        %533 = vmatpush1.msra.mxu0 0.0
        %534 = vmatprep.subr.mxu0 0.0
        %535 = vmatpush1.msra.mxu0 0.0
        %536 = vmatprep.mubr.f32.mxu0 0.0
        %v537 = vand.u32 %v234, 4294901760
        %v538 = vsub.f32 %v234, %v537
        %v539 = vand.u32 %v538, 4294901760
        %540 = vmatmul.mubr.f32.gmra.mrb[0].mxu0 %v539
        %v541 = vpop.f32.mrb[0].mxu0
        %v542 = vadd.f32 %v467, %v541
        %v543 = vpop.f32.mrb[0].mxu0
        %544 = vdwg.mxu0
        %545 = vmatprep.subr.mxu0 0.0
        %v546 = vand.u32 %v230, 4294901760
        %v547 = vsub.f32 %v230, %v546
        %v548 = vand.u32 %v547, 4294901760
        %549 = vmatpush1.msra.mxu0 %v548
        %550 = vmatprep.subr.mxu0 0.0
        %v551 = vand.u32 %v231, 4294901760
        %v552 = vsub.f32 %v231, %v551
        %v553 = vand.u32 %v552, 4294901760
        %554 = vmatpush1.msra.mxu0 %v553
        %555 = vmatprep.subr.mxu0 0.0
        %556 = vmatpush1.msra.mxu0 0.0
        %557 = vmatprep.subr.mxu0 0.0
        %558 = vmatpush1.msra.mxu0 0.0
        %559 = vmatprep.subr.mxu0 0.0
        %560 = vmatpush1.msra.mxu0 0.0
        %561 = vmatprep.subr.mxu0 0.0
        %562 = vmatpush1.msra.mxu0 0.0
        %563 = vmatprep.subr.mxu0 0.0
        %564 = vmatpush1.msra.mxu0 0.0
        %565 = vmatprep.subr.mxu0 0.0
        %566 = vmatpush1.msra.mxu0 0.0
        %567 = vmatprep.subr.mxu0 0.0
        %568 = vmatpush1.msra.mxu0 0.0
        %569 = vmatprep.subr.mxu0 0.0
        %570 = vmatpush1.msra.mxu0 0.0
        %571 = vmatprep.subr.mxu0 0.0
        %572 = vmatpush1.msra.mxu0 0.0
        %573 = vmatprep.subr.mxu0 0.0
        %574 = vmatpush1.msra.mxu0 0.0
        %575 = vmatprep.subr.mxu0 0.0
        %576 = vmatpush1.msra.mxu0 0.0
        %577 = vmatprep.subr.mxu0 0.0
        %578 = vmatpush1.msra.mxu0 0.0
        %579 = vmatprep.subr.mxu0 0.0
        %580 = vmatpush1.msra.mxu0 0.0
        %581 = vmatprep.subr.mxu0 0.0
        %582 = vmatpush1.msra.mxu0 0.0
        %583 = vmatprep.subr.mxu0 0.0
        %584 = vmatpush1.msra.mxu0 0.0
        %585 = vmatprep.subr.mxu0 0.0
        %586 = vmatpush1.msra.mxu0 0.0
        %587 = vmatprep.subr.mxu0 0.0
        %588 = vmatpush1.msra.mxu0 0.0
        %589 = vmatprep.subr.mxu0 0.0
        %590 = vmatpush1.msra.mxu0 0.0
        %591 = vmatprep.subr.mxu0 0.0
        %592 = vmatpush1.msra.mxu0 0.0
        %593 = vmatprep.subr.mxu0 0.0
        %594 = vmatpush1.msra.mxu0 0.0
        %595 = vmatprep.subr.mxu0 0.0
        %596 = vmatpush1.msra.mxu0 0.0
        %597 = vmatprep.subr.mxu0 0.0
        %598 = vmatpush1.msra.mxu0 0.0
        %599 = vmatprep.subr.mxu0 0.0
        %600 = vmatpush1.msra.mxu0 0.0
        %601 = vmatprep.subr.mxu0 0.0
        %602 = vmatpush1.msra.mxu0 0.0
        %603 = vmatprep.subr.mxu0 0.0
        %604 = vmatpush1.msra.mxu0 0.0
        %605 = vmatprep.subr.mxu0 0.0
        %606 = vmatpush1.msra.mxu0 0.0
        %607 = vmatprep.subr.mxu0 0.0
        %608 = vmatpush1.msra.mxu0 0.0
        %609 = vmatprep.subr.mxu0 0.0
        %610 = vmatpush1.msra.mxu0 0.0
        %611 = vmatprep.subr.mxu0 0.0
        %612 = vmatpush1.msra.mxu0 0.0
        %613 = vmatprep.subr.mxu0 0.0
        %614 = vmatpush1.msra.mxu0 0.0
        %615 = vmatprep.mubr.f32.mxu0 0.0
        %v616 = vand.u32 %v234, 4294901760
        %617 = vmatmul.mubr.f32.gmra.mrb[0].mxu0 %v616
        %v618 = vpop.f32.mrb[0].mxu0
        %v619 = vadd.f32 %v542, %v618
        %v620 = vpop.f32.mrb[0].mxu0
        %621 = vdwg.mxu0
        %622 = vmatprep.subr.mxu0 0.0
        %v623 = vand.u32 %v230, 4294901760
        %624 = vmatpush1.msra.mxu0 %v623
        %625 = vmatprep.subr.mxu0 0.0
        %v626 = vand.u32 %v231, 4294901760
        %627 = vmatpush1.msra.mxu0 %v626
        %628 = vmatprep.subr.mxu0 0.0
        %629 = vmatpush1.msra.mxu0 0.0
        %630 = vmatprep.subr.mxu0 0.0
        %631 = vmatpush1.msra.mxu0 0.0
        %632 = vmatprep.subr.mxu0 0.0
        %633 = vmatpush1.msra.mxu0 0.0
        %634 = vmatprep.subr.mxu0 0.0
        %635 = vmatpush1.msra.mxu0 0.0
        %636 = vmatprep.subr.mxu0 0.0
        %637 = vmatpush1.msra.mxu0 0.0
        %638 = vmatprep.subr.mxu0 0.0
        %639 = vmatpush1.msra.mxu0 0.0
        %640 = vmatprep.subr.mxu0 0.0
        %641 = vmatpush1.msra.mxu0 0.0
        %642 = vmatprep.subr.mxu0 0.0
        %643 = vmatpush1.msra.mxu0 0.0
        %644 = vmatprep.subr.mxu0 0.0
        %645 = vmatpush1.msra.mxu0 0.0
        %646 = vmatprep.subr.mxu0 0.0
        %647 = vmatpush1.msra.mxu0 0.0
        %648 = vmatprep.subr.mxu0 0.0
        %649 = vmatpush1.msra.mxu0 0.0
        %650 = vmatprep.subr.mxu0 0.0
        %651 = vmatpush1.msra.mxu0 0.0
        %652 = vmatprep.subr.mxu0 0.0
        %653 = vmatpush1.msra.mxu0 0.0
        %654 = vmatprep.subr.mxu0 0.0
        %655 = vmatpush1.msra.mxu0 0.0
        %656 = vmatprep.subr.mxu0 0.0
        %657 = vmatpush1.msra.mxu0 0.0
        %658 = vmatprep.subr.mxu0 0.0
        %659 = vmatpush1.msra.mxu0 0.0
        %660 = vmatprep.subr.mxu0 0.0
        %661 = vmatpush1.msra.mxu0 0.0
        %662 = vmatprep.subr.mxu0 0.0
        %663 = vmatpush1.msra.mxu0 0.0
        %664 = vmatprep.subr.mxu0 0.0
        %665 = vmatpush1.msra.mxu0 0.0
        %666 = vmatprep.subr.mxu0 0.0
        %667 = vmatpush1.msra.mxu0 0.0
        %668 = vmatprep.subr.mxu0 0.0
        %669 = vmatpush1.msra.mxu0 0.0
        %670 = vmatprep.subr.mxu0 0.0
        %671 = vmatpush1.msra.mxu0 0.0
        %672 = vmatprep.subr.mxu0 0.0
        %673 = vmatpush1.msra.mxu0 0.0
        %674 = vmatprep.subr.mxu0 0.0
        %675 = vmatpush1.msra.mxu0 0.0
        %676 = vmatprep.subr.mxu0 0.0
        %677 = vmatpush1.msra.mxu0 0.0
        %678 = vmatprep.subr.mxu0 0.0
        %679 = vmatpush1.msra.mxu0 0.0
        %680 = vmatprep.subr.mxu0 0.0
        %681 = vmatpush1.msra.mxu0 0.0
        %682 = vmatprep.subr.mxu0 0.0
        %683 = vmatpush1.msra.mxu0 0.0
        %684 = vmatprep.subr.mxu0 0.0
        %685 = vmatpush1.msra.mxu0 0.0
        %686 = vmatprep.subr.mxu0 0.0
        %687 = vmatpush1.msra.mxu0 0.0
        %688 = vmatprep.mubr.f32.mxu0 0.0
        %v689 = vand.u32 %v234, 4294901760
        %690 = vmatmul.mubr.f32.gmra.mrb[0].mxu0 %v689
        %v691 = vpop.f32.mrb[0].mxu0
        %v692 = vadd.f32 %v619, %v691
        %v693 = vpop.f32.mrb[0].mxu0
        %694 = vdwg.mxu0
        %695 = vrot.lane.b32.xlu0 %v216, 1
        %v696 = vpop.permute.xlu0 %695
        %v697 = vsub.s32 %v216, %v696
        %v698 = vcvt.s32.f32 %v216
        %vm699 = vcmp.gt.s32.totalorder %v697, 1
        %v700 = vsel %vm699, %v697, 1
        %v701 = vcvt.s32.f32 %v700
        %703 = vrot.lane.b32.xlu0 %v701, 1
        %v704 = vpop.permute.xlu0 %703
        %v706 = vrcp.pop %v704
        %v707 = vmul.f32 %v698, %v706
        %709 = vset.pattern.permute.xlu0 2
        %710 = vperm.xlu0 %709, %v707
        %v711 = vpop.permute.xlu0 %710
        %v713 = vmul.f32 %v692, %v711
        %714 = vst [vmem:[%s208] sm:$0xff] %v713
        %s715 = sand.u32 %s106, 1
        %s716 = scalar_lea.sflag [#allocation4], %s715
        %s717 = sand.u32 %s106, 1
        %s718 = smul.addr %s717, 8
        %s719 = scalar_lea.vmem [#allocation5], %s718
        // Predicated region
        $region33: #{tpu_custom_call.1} parent=27 // pred_check
          %p720 = pneg %p116
        $region34: #{tpu_custom_call.1} parent=27 // pred_check_branch
          %722 = sbr.rel (%p720) target = $region36
        $region35: #{tpu_custom_call.1} parent=27 // pred_region
          %s724 = ssub.s32 128, 128
          %725 = vsyncadd %s716, %s724
          %s726 = sadd.s32 %s26, %s25
          %s727 = sadd.s32 %s726, %s24
          %s728 = smul.addr %s727, 128
          %s729 = scalar_lea.hbm %s2, %s728
          %s731 = sshll.u32 %s719, 4
          %s732 = int_to_ptr.vmem [resolvable:$true] %s731
          %734 = dma.vmem_to_hbm [thread:$0]  %s732, 128, %s729, %s716
        $region36: #{tpu_custom_call.1} parent=27 // pred_fallthru
          _
      $region28: #{tpu_custom_call.1} parent=5 // pred_fallthru
        _
      %p735 = scmp.le.s32.totalorder 2, %s14
      // Predicated region
      $region37: #{tpu_custom_call.1} parent=5 // pred_check
        %p736 = pneg %p735
      $region38: #{tpu_custom_call.1} parent=5 // pred_check_branch
        %738 = sbr.rel (%p736) target = $region40
      $region39: #{tpu_custom_call.1} parent=5 // pred_region
        %s739 = ssub.s32 %s14, 2
        // Predicated region
        $region41: #{tpu_custom_call.1} parent=39 // pred_check
          %p740 = pneg %p122
        $region42: #{tpu_custom_call.1} parent=39 // pred_check_branch
          %742 = sbr.rel (%p740) target = $region44
        $region43: #{tpu_custom_call.1} parent=39 // pred_region
          %s743 = sand.u32 %s107, 1
          %s744 = scalar_lea.sflag [#allocation4], %s743
          %s745 = sand.u32 %s107, 1
          %s746 = smul.addr %s745, 8
          %s747 = scalar_lea.vmem [#allocation5], %s746
          %748 = dma.done %s744, 128
        $region44: #{tpu_custom_call.1} parent=39 // pred_fallthru
          _
      $region40: #{tpu_custom_call.1} parent=5 // pred_fallthru
        _
    $region6: #{tpu_custom_call.1} parent=1 // loop_footer
      %s18 = sadd.s32 1, %s14
    $region7: #{tpu_custom_call.1} parent=1 // loop_footer_branch
      %13 = sbr.rel target = $region3
    $region8: #{tpu_custom_call.1} parent=1 // loop_exit
      _
    %749 = vsyncpa [#allocation3], 1
    %s750 = scalar_lea.sflag [#allocation3], 1
    %751 = vsyncpa %s750, 1
    %752 = vsyncpa [#allocation4], 1
    %s753 = scalar_lea.sflag [#allocation4], 1
    %754 = vsyncpa %s753, 1

</llo_original>
